<compile_context>
chip_gen: v7x
topology: tpu7x:2x2x1
jax: 0.10.0
libtpu: 0.0.40
codegen_flags: <defaults>
</compile_context>

<pallas_src>
import functools
import math

import jax
import jax.numpy as jnp
from jax.experimental import pallas as pl
from jax.experimental.pallas import tpu as pltpu

# ----------------------------------------------------------------------------- config
GEO_CH = 4
MODEL_CH = 32
CHANNEL_MULT = (1, 2)
IS_ROLLOUT = True
NUM_RES_BLOCKS = 1
N_BATCH = 2
H, W, D = 16, 16, 8
S_XY = H * W                 # 256 lanes (one xy image)
S_Z = H * D                  # 128 lanes (one xz/yz image)
SLAB_L = S_XY                # lane width of every slab step
NUM_GROUPS = 32
GN_EPS = 1e-5
TED = 4 * MODEL_CH           # time-embedding width

assert H * D == W * D, "xz / yz planes must share spatial size"
assert S_XY == N_BATCH * S_Z, "slab layout requires H*W == N * H*D"

_PAR = pltpu.CompilerParams(dimension_semantics=("parallel",))


def _step_idx(s):
    return (s, 0, 0)


def _plane_idx(s):
    # grid step -> plane index: steps [xy img0, xy img1, xz, yz] -> [0, 0, 1, 2]
    return (jnp.maximum(s - 1, 0), 0, 0)


def _silu(y):
    return y * jax.nn.sigmoid(y)


# ----------------------------------------------------------------------------- GN helper (in-kernel)
def _gn_apply(z, gamma, beta, sc, sh, split, *, groups, eps):
    """GroupNorm (+ optional per-half scale/shift) + SiLU on a (C, L) f32 tile.

    split (traced bool): True  -> the L lanes hold two images side by side
                                  (per-image stats over each 128-lane half)
                         False -> one image spans all L lanes.
    """
    C, L = z.shape
    cg = C // groups
    half = L // 2
    lane = jax.lax.broadcasted_iota(jnp.int32, (1, L), 1)
    lo = lane < half

    zsq = z * z
    s1 = jnp.sum(z, axis=1, keepdims=True)
    s2 = jnp.sum(zsq, axis=1, keepdims=True)
    s1l = jnp.sum(jnp.where(lo, z, 0.0), axis=1, keepdims=True)
    s2l = jnp.sum(jnp.where(lo, zsq, 0.0), axis=1, keepdims=True)
    stats = jnp.concatenate([s1, s2, s1l, s2l], axis=1)          # (C, 4)
    if cg > 1:
        # combine the cg channels of each group with a 0/1 mask matmul (MXU),
        # avoiding in-kernel sublane reshapes.
        ci = jax.lax.broadcasted_iota(jnp.int32, (C, C), 0) // cg
        cj = jax.lax.broadcasted_iota(jnp.int32, (C, C), 1) // cg
        gmask = (ci == cj).astype(jnp.float32)
        stats = jnp.dot(gmask, stats, preferred_element_type=jnp.float32)
    s1, s2 = stats[:, 0:1], stats[:, 1:2]
    s1l, s2l = stats[:, 2:3], stats[:, 3:4]
    s1h, s2h = s1 - s1l, s2 - s2l

    n_full = float(cg * L)
    n_half = float(cg * half)
    m_f = s1 / n_full
    v_f = s2 / n_full - m_f * m_f
    m_l = s1l / n_half
    v_l = s2l / n_half - m_l * m_l
    m_h = s1h / n_half
    v_h = s2h / n_half - m_h * m_h

    m = jnp.where(split, jnp.where(lo, m_l, m_h), m_f)
    v = jnp.where(split, jnp.where(lo, v_l, v_h), v_f)

    y = (z - m) * jax.lax.rsqrt(v + eps) * gamma + beta
    if sc is not None:
        y = y * (1.0 + jnp.where(lo, sc[:, 0:1], sc[:, 1:2]))
        y = y + jnp.where(lo, sh[:, 0:1], sh[:, 1:2])
    return _silu(y)


# ----------------------------------------------------------------------------- kernels
def _gn_act_kernel(x_ref, g_ref, b_ref, o_ref, *, groups, eps):
    split = pl.program_id(0) >= 2
    y = _gn_apply(x_ref[...], g_ref[...], b_ref[...], None, None, split,
                  groups=groups, eps=eps)
    o_ref[...] = y.astype(o_ref.dtype)


def _conv_gn_act_kernel(w_ref, p_ref, b_ref, g_ref, be_ref, sc_ref, sh_ref,
                        o_ref, *, groups, eps):
    z = jnp.dot(w_ref[...], p_ref[...], preferred_element_type=jnp.float32)
    z = z + b_ref[...]
    split = pl.program_id(0) >= 2
    y = _gn_apply(z, g_ref[...], be_ref[...], sc_ref[...], sh_ref[...], split,
                  groups=groups, eps=eps)
    o_ref[...] = y.astype(o_ref.dtype)


def _conv_kernel(w_ref, p_ref, b_ref, o_ref):
    z = jnp.dot(w_ref[...], p_ref[...], preferred_element_type=jnp.float32)
    o_ref[...] = (z + b_ref[...]).astype(o_ref.dtype)


def _conv_add_kernel(w_ref, p_ref, b_ref, r_ref, o_ref):
    z = jnp.dot(w_ref[...], p_ref[...], preferred_element_type=jnp.float32)
    o_ref[...] = (z + b_ref[...] + r_ref[...]).astype(o_ref.dtype)


def _conv_skipconv_kernel(w_ref, p_ref, b_ref, ws_ref, px_ref, bs_ref, o_ref):
    z = jnp.dot(w_ref[...], p_ref[...], preferred_element_type=jnp.float32)
    z = z + jnp.dot(ws_ref[...], px_ref[...], preferred_element_type=jnp.float32)
    o_ref[...] = (z + b_ref[...] + bs_ref[...]).astype(o_ref.dtype)


def _linear_kernel(x_ref, w_ref, b_ref, o_ref, *, apply_silu):
    y = jnp.dot(x_ref[...], w_ref[...], preferred_element_type=jnp.float32)
    y = y + b_ref[...]
    if apply_silu:
        y = _silu(y)
    o_ref[...] = y


# ----------------------------------------------------------------------------- pallas_call wrappers
def gn_act(np_, slab):
    """TriplaneNorm + SiLU on a (4, C, 256) f32 slab -> bf16 slab."""
    P, C, L = slab.shape
    return pl.pallas_call(
        functools.partial(_gn_act_kernel, groups=NUM_GROUPS, eps=GN_EPS),
        out_shape=jax.ShapeDtypeStruct((P, C, L), jnp.bfloat16),
        grid=(P,),
        in_specs=[
            pl.BlockSpec((None, C, L), _step_idx),
            pl.BlockSpec((None, C, 1), _plane_idx),
            pl.BlockSpec((None, C, 1), _plane_idx),
        ],
        out_specs=pl.BlockSpec((None, C, L), _step_idx),
        compiler_params=_PAR,
    )(slab, np_["g"], np_["b"])


def conv_gn_act(cp, patches, np_, sc4, sh4):
    """conv + bias + GroupNorm + (1+scale)*x+shift + SiLU, fused (bf16 out)."""
    P, K, L = patches.shape
    Cout = cp["w"].shape[1]
    return pl.pallas_call(
        functools.partial(_conv_gn_act_kernel, groups=NUM_GROUPS, eps=GN_EPS),
        out_shape=jax.ShapeDtypeStruct((P, Cout, L), jnp.bfloat16),
        grid=(P,),
        in_specs=[
            pl.BlockSpec((None, Cout, K), _plane_idx),
            pl.BlockSpec((None, K, L), _step_idx),
            pl.BlockSpec((None, Cout, 1), _plane_idx),
            pl.BlockSpec((None, Cout, 1), _plane_idx),
            pl.BlockSpec((None, Cout, 1), _plane_idx),
            pl.BlockSpec((None, Cout, 2), _step_idx),
            pl.BlockSpec((None, Cout, 2), _step_idx),
        ],
        out_specs=pl.BlockSpec((None, Cout, L), _step_idx),
        compiler_params=_PAR,
    )(cp["w"], patches, cp["b"], np_["g"], np_["b"], sc4, sh4)


def conv_plain(cp, patches, out_dtype=jnp.float32):
    P, K, L = patches.shape
    Cout = cp["w"].shape[1]
    return pl.pallas_call(
        _conv_kernel,
        out_shape=jax.ShapeDtypeStruct((P, Cout, L), out_dtype),
        grid=(P,),
        in_specs=[
            pl.BlockSpec((None, Cout, K), _plane_idx),
            pl.BlockSpec((None, K, L), _step_idx),
            pl.BlockSpec((None, Cout, 1), _plane_idx),
        ],
        out_specs=pl.BlockSpec((None, Cout, L), _step_idx),
        compiler_params=_PAR,
    )(cp["w"], patches, cp["b"])


def conv_residual(cp, patches, res_slab):
    """out_conv + bias + identity skip add (residual stays f32), fused."""
    P, K, L = patches.shape
    Cout = cp["w"].shape[1]
    return pl.pallas_call(
        _conv_add_kernel,
        out_shape=jax.ShapeDtypeStruct((P, Cout, L), jnp.float32),
        grid=(P,),
        in_specs=[
            pl.BlockSpec((None, Cout, K), _plane_idx),
            pl.BlockSpec((None, K, L), _step_idx),
            pl.BlockSpec((None, Cout, 1), _plane_idx),
            pl.BlockSpec((None, Cout, L), _step_idx),
        ],
        out_specs=pl.BlockSpec((None, Cout, L), _step_idx),
        compiler_params=_PAR,
    )(cp["w"], patches, cp["b"], res_slab)


def conv_skipconv(cp, patches, sp, xpatches):
    """out_conv + bias + 1x1 skip conv of the block input + its bias, fused."""
    P, K, L = patches.shape
    Cout = cp["w"].shape[1]
    Cin = sp["w"].shape[2]
    return pl.pallas_call(
        _conv_skipconv_kernel,
        out_shape=jax.ShapeDtypeStruct((P, Cout, L), jnp.float32),
        grid=(P,),
        in_specs=[
            pl.BlockSpec((None, Cout, K), _plane_idx),
            pl.BlockSpec((None, K, L), _step_idx),
            pl.BlockSpec((None, Cout, 1), _plane_idx),
            pl.BlockSpec((None, Cout, Cin), _plane_idx),
            pl.BlockSpec((None, Cin, L), _step_idx),
            pl.BlockSpec((None, Cout, 1), _plane_idx),
        ],
        out_specs=pl.BlockSpec((None, Cout, L), _step_idx),
        compiler_params=_PAR,
    )(cp["w"], patches, cp["b"], sp["w"], xpatches, sp["b"])


def linear(x, p, *, apply_silu=False):
    M = x.shape[0]
    Dout = p["wt"].shape[1]
    return pl.pallas_call(
        functools.partial(_linear_kernel, apply_silu=apply_silu),
        out_shape=jax.ShapeDtypeStruct((M, Dout), jnp.float32),
    )(x.astype(jnp.bfloat16), p["wt"], p["b"])


# ----------------------------------------------------------------------------- slab <-> triplane glue (XLA)
def planes_to_slab(xy, xz, yz):
    N, C = xy.shape[:2]
    s01 = xy.reshape(N, C, S_XY)
    s2 = xz.reshape(N, C, S_Z).transpose(1, 0, 2).reshape(C, N * S_Z)
    s3 = yz.reshape(N, C, S_Z).transpose(1, 0, 2).reshape(C, N * S_Z)
    return jnp.concatenate([s01, s2[None], s3[None]], axis=0)


def slab_to_planes(slab):
    C = slab.shape[1]
    xy = slab[0:N_BATCH].reshape(N_BATCH, C, H, W)
    xz = slab[N_BATCH].reshape(C, N_BATCH, H, D).transpose(1, 0, 2, 3)
    yz = slab[N_BATCH + 1].reshape(C, N_BATCH, W, D).transpose(1, 0, 2, 3)
    return xy, xz, yz


def decompose_featmaps(x):
    xy = x[..., :H, :W]
    xz = x[..., :H, W:]
    yz = jnp.swapaxes(x[..., H:, :W], -1, -2)
    return xy, xz, yz


def compose_featmaps(xy, xz, yz):
    N, C = xy.shape[:2]
    empty = jnp.zeros((N, C, D, D), dtype=xy.dtype)
    top = jnp.concatenate([xy, xz], axis=-1)
    bot = jnp.concatenate([jnp.swapaxes(yz, -1, -2), empty], axis=-1)
    return jnp.concatenate([top, bot], axis=-2)


def im2col_nchw(x, k):
    """NCHW 'same' im2col -> (N, C*k*k, H*W); K order = (cin, di, dj)."""
    N, C, Hh, Ww = x.shape
    if k == 1:
        return x.reshape(N, C, Hh * Ww)
    ph = k // 2
    xp = jnp.pad(x, ((0, 0), (0, 0), (ph, ph), (ph, ph)))
    cols = [xp[:, :, i:i + Hh, j:j + Ww] for i in range(k) for j in range(k)]
    pat = jnp.stack(cols, axis=2)
    return pat.reshape(N, C * k * k, Hh * Ww)


def rollout_patches(slab_bf16, k, is_rollout):
    """(4, C, 256) bf16 slab -> (4, K, 256) bf16 conv patches (rollout + im2col).

    TODO(synk): plain-JAX glue; in-kernel im2col + in-kernel rollout means would
    cut the 9x patch HBM expansion further.
    """
    xy, xz, yz = slab_to_planes(slab_bf16)
    if is_rollout:
        f32, bf = jnp.float32, jnp.bfloat16
        m_yz_d = jnp.mean(yz.astype(f32), axis=-1, keepdims=True)   # (N,C,W,1)
        m_xz_d = jnp.mean(xz.astype(f32), axis=-1, keepdims=True)   # (N,C,H,1)
        m_xy_w = jnp.mean(xy.astype(f32), axis=-1, keepdims=True)   # (N,C,H,1)
        m_yz_w = jnp.mean(yz.astype(f32), axis=-2, keepdims=True)   # (N,C,1,D)
        m_xy_h = jnp.mean(xy.astype(f32), axis=-2, keepdims=True)   # (N,C,1,W)
        m_xz_h = jnp.mean(xz.astype(f32), axis=-2, keepdims=True)   # (N,C,1,D)
        xy_h = jnp.concatenate(
            [xy,
             jnp.broadcast_to(jnp.swapaxes(m_yz_d, -1, -2), xy.shape).astype(bf),
             jnp.broadcast_to(m_xz_d, xy.shape).astype(bf)], axis=1)
        xz_h = jnp.concatenate(
            [xz,
             jnp.broadcast_to(m_xy_w, xz.shape).astype(bf),
             jnp.broadcast_to(m_yz_w, xz.shape).astype(bf)], axis=1)
        yz_h = jnp.concatenate(
            [yz,
             jnp.broadcast_to(jnp.swapaxes(m_xy_h, -1, -2), yz.shape).astype(bf),
             jnp.broadcast_to(m_xz_h, yz.shape).astype(bf)], axis=1)
    else:
        xy_h, xz_h, yz_h = xy, xz, yz
    pxy = im2col_nchw(xy_h, k)                    # (N, K, 256)
    pxz = im2col_nchw(xz_h, k)                    # (N, K, 128)
    pyz = im2col_nchw(yz_h, k)
    Kdim = pxy.shape[1]
    s2 = pxz.transpose(1, 0, 2).reshape(Kdim, N_BATCH * S_Z)
    s3 = pyz.transpose(1, 0, 2).reshape(Kdim, N_BATCH * S_Z)
    return jnp.concatenate([pxy, s2[None], s3[None]], axis=0)


def emb_to_steps(v):
    """(N, C) per-image emb column -> (4, C, 2) per-step lane-half columns."""
    vt = v.T                                       # (C, N)
    c0 = jnp.broadcast_to(vt[:, 0:1], vt.shape)
    c1 = jnp.broadcast_to(vt[:, 1:2], vt.shape)
    return jnp.stack([c0, c1, vt, vt], axis=0)


def timestep_embedding(timesteps, dim, max_period=10000.0):
    half = dim // 2
    freqs = jnp.exp(-math.log(max_period) *
                    jnp.arange(half, dtype=jnp.float32) / half)
    args = timesteps.astype(jnp.float32)[:, None] * freqs[None]
    return jnp.concatenate([jnp.cos(args), jnp.sin(args)], axis=-1)


# ----------------------------------------------------------------------------- parameters (synthetic, kernel-ready layouts)
class KeyGen:
    def __init__(self, seed=0):
        self._key = jax.random.PRNGKey(seed)

    def __call__(self):
        self._key, sub = jax.random.split(self._key)
        return sub


def init_linear(kg, din, dout):
    w = 0.05 * jax.random.normal(kg(), (dout, din), jnp.float32)
    b = 0.01 * jax.random.normal(kg(), (dout,), jnp.float32)
    return {"wt": w.T.astype(jnp.bfloat16), "b": b.reshape(1, dout)}


def init_tri_conv(kg, cin_eff, cout, k, zero=False):
    K = cin_eff * k * k
    ws, bs = [], []
    for _ in range(3):                                   # xy, xz, yz
        if zero:
            w = jnp.zeros((cout, K), jnp.float32)
            b = jnp.zeros((cout,), jnp.float32)
        else:
            w = 0.05 * jax.random.normal(kg(), (cout, K), jnp.float32)
            b = 0.01 * jax.random.normal(kg(), (cout,), jnp.float32)
        ws.append(w)
        bs.append(b.reshape(cout, 1))
    return {"w": jnp.stack(ws).astype(jnp.bfloat16),     # (3, Cout, K) bf16
            "b": jnp.stack(bs),                          # (3, Cout, 1) f32
            "k": k}


def init_tri_norm(kg, c):
    return {"g": 1.0 + 0.05 * jax.random.normal(kg(), (3, c, 1), jnp.float32),
            "b": 0.05 * jax.random.normal(kg(), (3, c, 1), jnp.float32)}


def init_resblock(kg, cin, cout, is_rollout):
    return {
        "cin": cin, "cout": cout, "rollout": is_rollout,
        "in_norm": init_tri_norm(kg, cin),
        "in_conv": init_tri_conv(kg, 3 * cin if is_rollout else cin, cout, 3),
        "out_norm": init_tri_norm(kg, cout),
        # zero_module(TriplaneConv(...))
        "out_conv": init_tri_conv(kg, 3 * cout if is_rollout else cout, cout, 3,
                                  zero=True),
        "skip": None if cin == cout else init_tri_conv(kg, cin, cout, 1),
        "emb_w": 0.05 * jax.random.normal(kg(), (2 * cout, TED), jnp.float32),
        "emb_b": 0.01 * jax.random.normal(kg(), (2 * cout,), jnp.float32),
    }


def init_model(kg):
    mc = MODEL_CH
    params = {"time1": init_linear(kg, mc, TED),
              "time2": init_linear(kg, TED, TED)}
    ch = input_ch = int(CHANNEL_MULT[0] * mc)
    params["in_conv"] = init_tri_conv(kg, GEO_CH, ch, 1)
    input_block_chans = [ch]
    all_rbs = []

    inp_blocks = []
    for _level, mult in enumerate(CHANNEL_MULT):
        layers = []
        for _ in range(NUM_RES_BLOCKS):
            rb1 = init_resblock(kg, ch, int(mult * mc), IS_ROLLOUT)
            rb2 = init_resblock(kg, int(mult * mc), int(mult * mc), IS_ROLLOUT)
            layers += [rb1, rb2]
            all_rbs += [rb1, rb2]
        ch = int(mult * mc)
        input_block_chans.append(ch)
        inp_blocks.append(layers)
    params["input_blocks"] = inp_blocks

    out_blocks = []
    for level, mult in list(enumerate(CHANNEL_MULT))[::-1]:
        layers = []
        for i in range(NUM_RES_BLOCKS):
            ich = input_block_chans.pop()
            if level == len(CHANNEL_MULT) - 1 and i == 0:
                ich = 0
            rb1 = init_resblock(kg, ch + ich, int(mc * mult), IS_ROLLOUT)
            rb2 = init_resblock(kg, int(mult * mc), int(mult * mc), IS_ROLLOUT)
            layers += [rb1, rb2]
            all_rbs += [rb1, rb2]
            ch = int(mc * mult)
        out_blocks.append(layers)
    params["output_blocks"] = out_blocks

    # one combined emb projection for all resblocks (shared SiLU(emb) input)
    off, wts, bss = 0, [], []
    for rb in all_rbs:
        rb["emb_off"] = off
        off += 2 * rb["cout"]
        wts.append(rb.pop("emb_w").T)
        bss.append(rb.pop("emb_b"))
    params["emb_all"] = {"wt": jnp.concatenate(wts, axis=1).astype(jnp.bfloat16),
                         "b": jnp.concatenate(bss).reshape(1, -1)}

    params["out_norm"] = init_tri_norm(kg, ch)
    params["out_conv"] = init_tri_conv(kg, input_ch, GEO_CH, 1)
    return params


# ----------------------------------------------------------------------------- forward
def resblock_fwd(p, x_slab, emb_all):
    off, cout = p["emb_off"], p["cout"]
    scale = emb_all[:, off:off + cout]
    shift = emb_all[:, off + cout:off + 2 * cout]

    h = gn_act(p["in_norm"], x_slab)                                  # bf16
    pat = rollout_patches(h, 3, p["rollout"])
    h = conv_gn_act(p["in_conv"], pat, p["out_norm"],
                    emb_to_steps(scale), emb_to_steps(shift))         # bf16
    pat2 = rollout_patches(h, 3, p["rollout"])
    if p["skip"] is None:
        return conv_residual(p["out_conv"], pat2, x_slab)             # f32
    return conv_skipconv(p["out_conv"], pat2, p["skip"],
                         x_slab.astype(jnp.bfloat16))                 # f32


def model_forward(params, x, timesteps):
    temb = timestep_embedding(timesteps, MODEL_CH)
    h1 = linear(temb, params["time1"], apply_silu=True)
    s_emb = linear(h1, params["time2"], apply_silu=True)       # silu(time_embed)
    emb_all = linear(s_emb, params["emb_all"])                  # all scale/shift

    xy, xz, yz = decompose_featmaps(x)
    slab = planes_to_slab(xy, xz, yz)                           # (4, 4, 256)
    slab = conv_plain(params["in_conv"], slab.astype(jnp.bfloat16))

    hs = []
    for block in params["input_blocks"]:
        for rb in block:
            slab = resblock_fwd(rb, slab, emb_all)
        hs.append(slab)

    for li, block in enumerate(params["output_blocks"]):
        if li == 0:
            slab = hs.pop()
        else:
            slab = jnp.concatenate([slab, hs.pop()], axis=1)
        for rb in block:
            slab = resblock_fwd(rb, slab, emb_all)

    slab = gn_act(params["out_norm"], slab)                     # bf16
    slab = conv_plain(params["out_conv"], slab)                 # f32 (4, 4, 256)
    xy_o, xz_o, yz_o = slab_to_planes(slab)
    return compose_featmaps(xy_o, xz_o, yz_o)


# ----------------------------------------------------------------------------- main
if __name__ == "__main__":
    kg = KeyGen(seed=0)
    params = init_model(kg)

    key = jax.random.PRNGKey(0)
    kx, k1, k2, k3, k4 = jax.random.split(key, 5)
    x = jax.random.normal(kx, (N_BATCH, GEO_CH, H + D, W + D), jnp.float32)
    timesteps = jnp.array([5.0, 42.0], jnp.float32)

    # sanity check 1: Pallas linear vs XLA bf16 matmul
    a = jax.random.normal(k1, (2, 32), jnp.float32)
    wt = jax.random.normal(k2, (32, 128), jnp.float32).astype(jnp.bfloat16)
    bias = jax.random.normal(k3, (1, 128), jnp.float32)
    got = jax.block_until_ready(linear(a, {"wt": wt, "b": bias}))
    ref = jnp.dot(a.astype(jnp.bfloat16), wt,
                  preferred_element_type=jnp.float32) + bias
    assert jnp.allclose(got, ref, atol=1e-3, rtol=1e-3), "linear kernel mismatch"

    # sanity check 2: fused GroupNorm+SiLU kernel vs plain-JAX reference
    Cchk = 64
    kp = jax.random.split(k4, 3)
    cxy = jax.random.normal(kp[0], (N_BATCH, Cchk, H, W), jnp.float32)
    cxz = jax.random.normal(kp[1], (N_BATCH, Cchk, H, D), jnp.float32)
    cyz = jax.random.normal(kp[2], (N_BATCH, Cchk, W, D), jnp.float32)
    npar = init_tri_norm(kg, Cchk)
    gslab = gn_act(npar, planes_to_slab(cxy, cxz, cyz))
    gxy, gxz, gyz = slab_to_planes(gslab.astype(jnp.float32))

    def gn_silu_ref(v, g, b):
        n, c = v.shape[:2]
        vr = v.reshape(n, NUM_GROUPS, -1)
        m = vr.mean(axis=2, keepdims=True)
        var = vr.var(axis=2, keepdims=True)
        vn = ((vr - m) * jax.lax.rsqrt(var + GN_EPS)).reshape(v.shape)
        y = vn * g.reshape(1, c, 1, 1) + b.reshape(1, c, 1, 1)
        return y * jax.nn.sigmoid(y)

    for got_p, src_p, idx in ((gxy, cxy, 0), (gxz, cxz, 1), (gyz, cyz, 2)):
        ref_p = gn_silu_ref(src_p, npar["g"][idx, :, 0], npar["b"][idx, :, 0])
        assert jnp.allclose(got_p, ref_p, atol=5e-2, rtol=5e-2), \
            "groupnorm kernel mismatch"

    # full forward
    fwd = jax.jit(lambda xx, tt: model_forward(params, xx, tt))
    out = jax.block_until_ready(fwd(x, timesteps))

    assert out.shape == (N_BATCH, GEO_CH, H + D, W + D), out.shape
    assert bool(jnp.all(jnp.isfinite(out)))
    print("KERNEL_OK")
</pallas_src>

<mosaic_0001>
module attributes {stable_mosaic.version = 11 : i64} {
  func.func @_linear_kernel(%arg0: memref<2x32xbf16, #tpu.memory_space<vmem>>, %arg1: memref<32x128xbf16, #tpu.memory_space<vmem>>, %arg2: memref<1x128xf32, #tpu.memory_space<vmem>>, %arg3: memref<2x128xf32, #tpu.memory_space<vmem>>) attributes {dimension_semantics = [], scalar_prefetch = 0 : i64, scratch_operands = 0 : i64, tpu.core_type = #tpu.core_type<tc>} {
    %c0 = arith.constant 0 : index
    %c0_0 = arith.constant 0 : index
    %0 = vector.load %arg0[%c0, %c0_0] : memref<2x32xbf16, #tpu.memory_space<vmem>>, vector<2x32xbf16>
    %c0_1 = arith.constant 0 : index
    %c0_2 = arith.constant 0 : index
    %1 = vector.load %arg1[%c0_1, %c0_2] : memref<32x128xbf16, #tpu.memory_space<vmem>>, vector<32x128xbf16>
    %cst = arith.constant dense<0.000000e+00> : vector<2x128xf32>
    %2 = tpu.matmul %0, %1, %cst {dimension_numbers = #tpu.dot_dimension_numbers<[1], [0], [0], [1], [0, 0, 1, 1], [], []>} : vector<2x32xbf16>, vector<32x128xbf16>, vector<2x128xf32> -> vector<2x128xf32>
    %c0_3 = arith.constant 0 : index
    %c0_4 = arith.constant 0 : index
    %3 = vector.load %arg2[%c0_3, %c0_4] : memref<1x128xf32, #tpu.memory_space<vmem>>, vector<1x128xf32>
    %4 = vector.broadcast %3 : vector<1x128xf32> to vector<2x128xf32>
    %5 = arith.addf %2, %4 : vector<2x128xf32>
    %c0_5 = arith.constant 0 : index
    %c0_6 = arith.constant 0 : index
    %6 = vector.load %arg3[%c0_5, %c0_6] : memref<2x128xf32, #tpu.memory_space<vmem>>, vector<2x128xf32>
    tpu.vector_store %arg3[%c0_5, %c0_6], %5 {strides = array<i32>} : memref<2x128xf32, #tpu.memory_space<vmem>>, vector<2x128xf32>,
    return
  }
}

</mosaic_0001>

<llo_original>
// kernel: tpu_custom_call.1
$region0: #{tpu_custom_call.1}
  #allocation0 [shape = 'u32[]', space=smem, size = 0x4, offset = 0x4, fixed_abs, tag = 'smem constant byte address 0x4 - core index']
  #allocation1 [shape = 'u32[144,128]{1,0:T(1,128)}', space=vmem, size = 0x12000, scoped, tag = 'internal scratch']
  %s0 = inlined_call_operand.hbm [shape: bf16[2,32], index: 0, kind: input, shape index: {}]
  %s1 = inlined_call_operand.hbm [shape: bf16[32,128], index: 1, kind: input, shape index: {}]
  %s2 = inlined_call_operand.vmem [shape: f32[1,128], index: 2, kind: input, shape index: {}]
  %s3 = inlined_call_operand.hbm [shape: f32[2,128], index: 3, kind: output, shape index: {}]
  %s4 = sld [smem:[#allocation0]]
  $region30: #{tpu_custom_call.1} parent=0
    _
  %s6 = ssub.s32 1, %s4
  %s7 = scalar_select 0, %s6, %s4
  $region1: #{tpu_custom_call.1} parent=0
    #allocation2 [shape = 'u8[512]{0}', space=vmem, size = 0x400, scoped, tag = 'input window, operand 0, single buffered']
    #allocation3 [shape = 's32[1]{0}', space=sflag, size = 0x4, scoped, tag = 'scoped memory for tpu_custom_call.1']
    #allocation4 [shape = 's32[1]{0}', space=sflag, size = 0x4, scoped, tag = 'scoped memory for tpu_custom_call.1']
    #allocation5 [shape = 'u8[8192]{0}', space=vmem, size = 0x2000, scoped, tag = 'input window, operand 1, single buffered']
    #allocation6 [shape = 's32[1]{0}', space=sflag, size = 0x4, scoped, tag = 'scoped memory for tpu_custom_call.1']
    #allocation7 [shape = 'u8[1024]{0}', space=vmem, size = 0x400, scoped, tag = 'output window, operand 0, single buffered']
    %8 = vsyncpa [#allocation3], 0
    %9 = vsyncpa [#allocation6], 0
    %10 = vsyncpa [#allocation4], 0
    // Predicated region
    $region2: #{tpu_custom_call.1} parent=1 // pred_check
      _
    $region3: #{tpu_custom_call.1} parent=1 // pred_check_branch
      %12 = sbr.rel (0) target = $region5
    $region4: #{tpu_custom_call.1} parent=1 // pred_region
      %s14 = ssub.s32 16, 16
      %15 = vsyncadd [#allocation3], %s14
      %s17 = sshll.u32 [#allocation2], 4
      %s18 = int_to_ptr.vmem [resolvable:$true] %s17
      %20 = dma.hbm_to_vmem [thread:$0]  %s0, 16, %s18, [#allocation3]
    $region5: #{tpu_custom_call.1} parent=1 // pred_fallthru
      _
    // Predicated region
    $region6: #{tpu_custom_call.1} parent=1 // pred_check
      _
    $region7: #{tpu_custom_call.1} parent=1 // pred_check_branch
      %22 = sbr.rel (0) target = $region9
    $region8: #{tpu_custom_call.1} parent=1 // pred_region
      %s24 = ssub.s32 256, 256
      %25 = vsyncadd [#allocation6], %s24
      %s26 = sshll.u32 [#allocation5], 4
      %s27 = int_to_ptr.vmem [resolvable:$true] %s26
      %32 = dma.hbm_to_vmem [thread:$0]  %s1, 256, %s27, [#allocation6], 64, 64, 4
    $region9: #{tpu_custom_call.1} parent=1 // pred_fallthru
      _
    // Predicated region
    $region10: #{tpu_custom_call.1} parent=1 // pred_check
      _
    $region11: #{tpu_custom_call.1} parent=1 // pred_check_branch
      %34 = sbr.rel (0) target = $region13
    $region12: #{tpu_custom_call.1} parent=1 // pred_region
      _
    $region13: #{tpu_custom_call.1} parent=1 // pred_fallthru
      _
    // Predicated region
    $region14: #{tpu_custom_call.1} parent=1 // pred_check
      _
    $region15: #{tpu_custom_call.1} parent=1 // pred_check_branch
      %36 = sbr.rel (0) target = $region17
    $region16: #{tpu_custom_call.1} parent=1 // pred_region
      %37 = dma.done [#allocation3], 16
    $region17: #{tpu_custom_call.1} parent=1 // pred_fallthru
      _
    // Predicated region
    $region18: #{tpu_custom_call.1} parent=1 // pred_check
      _
    $region19: #{tpu_custom_call.1} parent=1 // pred_check_branch
      %39 = sbr.rel (0) target = $region21
    $region20: #{tpu_custom_call.1} parent=1 // pred_region
      %40 = dma.done [#allocation6], 256
    $region21: #{tpu_custom_call.1} parent=1 // pred_fallthru
      _
    %v42 = vld [vmem:[#allocation2] sm:$0x1]
    %v43 = vld [vmem:[#allocation5] sm:$0xf]
    %v44 = vld [vmem:[#allocation5 + $0x4] sm:$0xf]
    %v45 = vld [vmem:[#allocation5 + $0x8] sm:$0xf]
    %v46 = vld [vmem:[#allocation5 + $0xc] sm:$0xf]
    %v47 = vld [vmem:[%s2] sm:$0x1]
    %v49 = vlaneseq
    %v50 = vshrl.u32 %v49, 7
    %v51 = vsub.s32 0, %v50
    %v52 = vrot.slane %v47, %v51
    %v58 = vunpack.c.l.b16 %v43
    %v59 = vunpack.c.l.b16 %v44
    %v60 = vunpack.c.l.b16 %v45
    %v61 = vunpack.c.l.b16 %v46
    %v62 = vpack.c.b16 %v59, %v58
    %v63 = vpack.c.b16 %v61, %v60
    %vm66 = vcmask 261120
    %v68 = vsel %vm66, %v42, 0
    %70 = vmatprep.subr.bf16.mxu0 0
    %71 = vmatpush1.bf16.msra.mxu0 %v62
    %72 = vmatprep.subr.bf16.mxu0 0
    %73 = vmatpush1.bf16.msra.mxu0 %v63
    %74 = vmatprep.subr.bf16.mxu0 0
    %75 = vmatpush1.bf16.msra.mxu0 0
    %76 = vmatprep.subr.bf16.mxu0 0
    %77 = vmatpush1.bf16.msra.mxu0 0
    %78 = vmatprep.subr.bf16.mxu0 0
    %79 = vmatpush1.bf16.msra.mxu0 0
    %80 = vmatprep.subr.bf16.mxu0 0
    %81 = vmatpush1.bf16.msra.mxu0 0
    %82 = vmatprep.subr.bf16.mxu0 0
    %83 = vmatpush1.bf16.msra.mxu0 0
    %84 = vmatprep.subr.bf16.mxu0 0
    %85 = vmatpush1.bf16.msra.mxu0 0
    %86 = vmatprep.subr.bf16.mxu0 0
    %87 = vmatpush1.bf16.msra.mxu0 0
    %88 = vmatprep.subr.bf16.mxu0 0
    %89 = vmatpush1.bf16.msra.mxu0 0
    %90 = vmatprep.subr.bf16.mxu0 0
    %91 = vmatpush1.bf16.msra.mxu0 0
    %92 = vmatprep.subr.bf16.mxu0 0
    %93 = vmatpush1.bf16.msra.mxu0 0
    %94 = vmatprep.subr.bf16.mxu0 0
    %95 = vmatpush1.bf16.msra.mxu0 0
    %96 = vmatprep.subr.bf16.mxu0 0
    %97 = vmatpush1.bf16.msra.mxu0 0
    %98 = vmatprep.subr.bf16.mxu0 0
    %99 = vmatpush1.bf16.msra.mxu0 0
    %100 = vmatprep.subr.bf16.mxu0 0
    %101 = vmatpush1.bf16.msra.mxu0 0
    %102 = vmatprep.mubr.bf16.mxu0 0
    %103 = vmatmul.mubr.bf16.gmra.mrb[0].mxu0 %v68
    %v104 = vpop.f32.mrb[0].mxu0
    %v105 = vadd.f32 %v52, %v104
    %v106 = vpop.f32.mrb[0].mxu0
    %v107 = vpop.f32.mrb[0].mxu0
    %v108 = vpop.f32.mrb[0].mxu0
    %109 = vdwg.mxu0
    %110 = vst [vmem:[#allocation7] sm:$0x3] %v105
    // Predicated region
    $region22: #{tpu_custom_call.1} parent=1 // pred_check
      _
    $region23: #{tpu_custom_call.1} parent=1 // pred_check_branch
      %112 = sbr.rel (0) target = $region25
    $region24: #{tpu_custom_call.1} parent=1 // pred_region
      %s114 = ssub.s32 32, 32
      %115 = vsyncadd [#allocation4], %s114
      %s117 = sshll.u32 [#allocation7], 4
      %s118 = int_to_ptr.vmem [resolvable:$true] %s117
      %120 = dma.vmem_to_hbm [thread:$0]  %s118, 32, %s3, [#allocation4]
    $region25: #{tpu_custom_call.1} parent=1 // pred_fallthru
      _
    // Predicated region
    $region26: #{tpu_custom_call.1} parent=1 // pred_check
      _
    $region27: #{tpu_custom_call.1} parent=1 // pred_check_branch
      %122 = sbr.rel (0) target = $region29
    $region28: #{tpu_custom_call.1} parent=1 // pred_region
      %123 = dma.done [#allocation4], 32
    $region29: #{tpu_custom_call.1} parent=1 // pred_fallthru
      _
    %124 = vsyncpa [#allocation3], 1
    %125 = vsyncpa [#allocation6], 1
    %126 = vsyncpa [#allocation4], 1

</llo_original>
